<compile_context>
chip_gen: v7x
topology: tpu7x:2x2x1
jax: 0.10.0
libtpu: 0.0.40
codegen_flags: <defaults>
</compile_context>

<pallas_src>
import functools

import numpy as np
import jax
import jax.numpy as jnp
from jax.experimental import pallas as pl
from jax.experimental.pallas import tpu as pltpu


_LANE = 128
_MAX_TILE = 2048             # lanes per output block (multiple of 128)
_MAX_BLOCK_BYTES = 4 << 20   # per-block footprint cap (safe for v5e 16 MiB / v7x 64 MiB)


def _round_up(x, m):
    return ((x + m - 1) // m) * m


# ---------------------------------------------------------------------------
# Parameter / buffer setup (deterministic, mirrors module __init__)
# ---------------------------------------------------------------------------
def generate_cell_anchors(stride=8, sizes=(4, 8, 16)):
    """NumPy re-implementation of generate_anchors -> (A, 2) float32."""
    scales = np.asarray(sizes, dtype=np.float64) / float(stride)
    ctr = 0.0
    ws = float(stride) * scales              # (A,)
    ws = ws[:, np.newaxis]                   # (A, 1)
    anchors = np.hstack((ctr - 0.5 * ws, ctr + 0.5 * ws))  # (A, 2) f64
    return anchors.astype(np.float32)


def _row_offsets(stride, sizes, rows):
    """Compile-time per-row constant: offset[r] = base_anchor[r//2, r%2], zero-padded."""
    flat = generate_cell_anchors(stride, sizes).reshape(-1)   # [-hw0,+hw0,-hw1,...]
    off = np.zeros((rows, 1), dtype=np.float32)
    off[: flat.shape[0], 0] = flat
    return off


# ---------------------------------------------------------------------------
# Pallas kernel: lane-dense anchor-grid generation
# ---------------------------------------------------------------------------
def _anchor_kernel(off_ref, out_ref, *, stride):
    # out_ref: (ROWS, TILE) f32 block with the shift/time axis on the 128-lane dim.
    # Row r (r < 2A) holds base[r//2, r%2] + shift[col]; rows >= 2A and cols >= S
    # are padding, sliced off in the wrapper -- do not consume the raw output.
    rows, tile = out_ref.shape
    col = jax.lax.broadcasted_iota(jnp.int32, (rows, tile), 1)
    # Exact as long as shift values stay below 2^24 (asserted in the wrapper).
    shift = ((pl.program_id(0) * tile + col) * stride).astype(jnp.float32)
    out_ref[...] = shift + off_ref[...]      # (ROWS,1) broadcast along lanes


# ---------------------------------------------------------------------------
# Fused, cached grid-anchor computation (one jit dispatch per static config)
# ---------------------------------------------------------------------------
@functools.lru_cache(maxsize=None)
def _grid_anchors_cached(time_width, stride, sizes):
    assert time_width < (1 << 24), "shifts must stay exactly representable in f32"
    A = len(sizes)
    S = time_width // stride + 1              # len(arange(0, time_width+1, stride))
    rows = max(8, _round_up(2 * A, 8))        # sublane-padded 2A

    s_pad = _round_up(S, _LANE)
    if s_pad <= _MAX_TILE:
        tile = s_pad                          # single block; grid degenerates to (1,)
    else:
        # Large time_width: prefer exactly two 128-aligned blocks so the
        # "parallel" grid axis lets v7x's two TensorCores take one block each,
        # provided the per-block footprint stays small; else fixed-size tiles.
        s_pad = _round_up(s_pad, 2 * _LANE)
        half = s_pad // 2
        if rows * half * 4 <= _MAX_BLOCK_BYTES:
            tile = half
        else:
            tile = _MAX_TILE
            s_pad = _round_up(s_pad, tile)

    kernel = functools.partial(_anchor_kernel, stride=int(stride))

    call = pl.pallas_call(
        kernel,
        out_shape=jax.ShapeDtypeStruct((rows, s_pad), jnp.float32),
        grid=(s_pad // tile,),
        in_specs=[pl.BlockSpec((rows, 1), lambda i: (0, 0))],   # resident constant
        out_specs=pl.BlockSpec((rows, tile), lambda i: (0, i)),
        compiler_params=pltpu.CompilerParams(
            dimension_semantics=("parallel",)),
        cost_estimate=pl.CostEstimate(
            flops=2 * rows * s_pad,
            transcendentals=0,
            bytes_accessed=rows * s_pad * 4 + rows * 4),
    )

    @jax.jit
    def run(off):
        raw = call(off)
        # (ROWS, S_pad) -> (S, 2A) -> (S*A, 2); matches torch reshape(-1, 2) order.
        return raw[: 2 * A, :S].T.reshape(S * A, 2)

    off = jnp.asarray(_row_offsets(stride, sizes, rows))
    return jax.block_until_ready(run(off))


# ---------------------------------------------------------------------------
# Module wrapper (mirrors the PyTorch AnchorGenerator interface)
# ---------------------------------------------------------------------------
class AnchorGeneratorPallas:
    def __init__(self, sizes=(4, 8, 16), anchor_stride=8):
        self.stride = int(anchor_stride)
        self.sizes = tuple(float(s) for s in sizes)
        self.cell_anchors = [generate_cell_anchors(anchor_stride, sizes)]

    def num_anchors_per_location(self):
        return [len(a) for a in self.cell_anchors]

    def grid_anchors(self, time_width):
        return [_grid_anchors_cached(int(time_width), self.stride, self.sizes)]

    def __call__(self, rel_feats):
        # Anchors depend only on rel_feats.shape[2]; result is cached per shape.
        return self.grid_anchors(rel_feats.shape[2])


# ---------------------------------------------------------------------------
# Reference (pure numpy) for in-script verification
# ---------------------------------------------------------------------------
def _reference(time_width, stride, cell_anchors):
    shifts = np.arange(0, time_width + 1, step=stride, dtype=np.float32)
    out = (shifts.reshape(-1, 1, 1) + cell_anchors.reshape(1, -1, 1)).reshape(-1, 2)
    return out.astype(np.float32)


if __name__ == "__main__":
    key = jax.random.PRNGKey(0)
    # rel_feats: NCHW-like (N, C, T, W); only shape[2] is used by forward()
    rel_feats = jax.random.normal(key, (2, 4, 16, 16), dtype=jnp.float32)

    gen = AnchorGeneratorPallas(sizes=(4, 8, 16), anchor_stride=8)
    anchors = gen(rel_feats)
    anchors = [jax.block_until_ready(a) for a in anchors]

    ref = _reference(rel_feats.shape[2], gen.stride, gen.cell_anchors[0])
    np.testing.assert_allclose(np.asarray(anchors[0]), ref, rtol=0, atol=0)
    assert anchors[0].shape == ref.shape and anchors[0].dtype == jnp.float32

    # Second forward hits the lru_cache: no re-trace / re-dispatch.
    anchors2 = gen(rel_feats)
    np.testing.assert_allclose(np.asarray(anchors2[0]), ref, rtol=0, atol=0)

    print("KERNEL_OK")
</pallas_src>

<mosaic_0001>
module attributes {stable_mosaic.version = 11 : i64} {
  func.func @_anchor_kernel(%arg0: i32, %arg1: memref<8x1xf32, #tpu.memory_space<vmem>>, %arg2: memref<8x128xf32, #tpu.memory_space<vmem>>) attributes {dimension_semantics = [#tpu.dimension_semantics<parallel>], iteration_bounds = array<i64: 1>, scalar_prefetch = 0 : i64, scratch_operands = 0 : i64, tpu.core_type = #tpu.core_type<tc>, window_params = [{pipeline_mode = #tpu.pipeline_mode<synchronous>, transform_indices = @transform_0, window_bounds = array<i64: 8, 1>}, {transform_indices = @transform_1, window_bounds = array<i64: 8, 128>}]} {
    %0 = tpu.iota {dimensions = array<i32: 1>} : vector<8x128xi32>
    %c128_i32 = arith.constant 128 : i32
    %1 = arith.muli %arg0, %c128_i32 : i32
    %2 = vector.broadcast %1 : i32 to vector<8x128xi32>
    %3 = arith.addi %2, %0 : vector<8x128xi32>
    %c8_i32 = arith.constant 8 : i32
    %4 = vector.broadcast %c8_i32 : i32 to vector<8x128xi32>
    %5 = arith.muli %3, %4 : vector<8x128xi32>
    %6 = arith.sitofp %5 : vector<8x128xi32> to vector<8x128xf32>
    %c0 = arith.constant 0 : index
    %c0_0 = arith.constant 0 : index
    %7 = vector.load %arg1[%c0, %c0_0] : memref<8x1xf32, #tpu.memory_space<vmem>>, vector<8x1xf32>
    %8 = vector.broadcast %7 : vector<8x1xf32> to vector<8x128xf32>
    %9 = arith.addf %6, %8 : vector<8x128xf32>
    %c0_1 = arith.constant 0 : index
    %c0_2 = arith.constant 0 : index
    %10 = vector.load %arg2[%c0_1, %c0_2] : memref<8x128xf32, #tpu.memory_space<vmem>>, vector<8x128xf32>
    tpu.vector_store %arg2[%c0_1, %c0_2], %9 {strides = array<i32>} : memref<8x128xf32, #tpu.memory_space<vmem>>, vector<8x128xf32>,
    return
  }
  func.func @transform_0(%arg0: i32) -> (i32, i32) {
    %c0_i32 = arith.constant 0 : i32
    %c0_i32_0 = arith.constant 0 : i32
    %c0_i32_1 = arith.constant 0 : i32
    return %c0_i32, %c0_i32_0 : i32, i32
  }
  func.func @transform_1(%arg0: i32) -> (i32, i32) {
    %c0_i32 = arith.constant 0 : i32
    %c0_i32_0 = arith.constant 0 : i32
    return %c0_i32, %arg0 : i32, i32
  }
}

</mosaic_0001>

<llo_original>
// kernel: run.1
$region0: #{run.1}
  #allocation0 [shape = 'u32[]', space=smem, size = 0x4, offset = 0x4, fixed_abs, tag = 'smem constant byte address 0x4 - core index']
  #allocation1 [shape = 'u32[144,128]{1,0:T(1,128)}', space=vmem, size = 0x12000, scoped, tag = 'internal scratch']
  %s0 = inlined_call_operand.vmem [shape: f32[8,1], index: 0, kind: input, shape index: {}]
  %s1 = inlined_call_operand.vmem [shape: f32[8,128], index: 1, kind: output, shape index: {}]
  %s2 = sld [smem:[#allocation0]]
  $region14: #{run.1} parent=0
    _
  %s4 = ssub.s32 1, %s2
  %s5 = scalar_select 0, %s4, %s2
  // Predicated region
  $region2: #{run.1} parent=0 // pred_check
    _
  $region3: #{run.1} parent=0 // pred_check_branch
    %7 = sbr.rel (0) target = $region5
  $region4: #{run.1} parent=0 // pred_region
    _
  $region5: #{run.1} parent=0 // pred_fallthru
    _
  %v8 = vlaneseq
  %v9 = vand.u32 %v8, 127
  %s10 = smul.u32 0, 128
  %v11 = vstv %s10
  %v12 = vadd.s32 %v11, %v9
  %v13 = vmul.u32 %v12, 8
  %v14 = vcvt.s32.f32 %v13
  %v15 = vld [vmem:[%s0] sm:$0xff]
  %17 = vset.pattern.permute.xlu0 0
  %18 = vperm.xlu0 %17, %v15
  %v19 = vpop.permute.xlu0 %18
  %v21 = vadd.f32 %v14, %v19
  %22 = vst [vmem:[%s1] sm:$0xff] %v21
  // Predicated region
  $region6: #{run.1} parent=0 // pred_check
    _
  $region7: #{run.1} parent=0 // pred_check_branch
    %24 = sbr.rel (0) target = $region9
  $region8: #{run.1} parent=0 // pred_region
    _
  $region9: #{run.1} parent=0 // pred_fallthru
    _
  // Predicated region
  $region10: #{run.1} parent=0 // pred_check
    _
  $region11: #{run.1} parent=0 // pred_check_branch
    %26 = sbr.rel (0) target = $region13
  $region12: #{run.1} parent=0 // pred_region
    _
  $region13: #{run.1} parent=0 // pred_fallthru
    _

</llo_original>
